<compile_context>
chip_gen: v7x
topology: tpu7x:2x2x1
jax: 0.10.0
libtpu: 0.0.40
codegen_flags: <defaults>
</compile_context>

<pallas_src>
import functools

import jax
import jax.numpy as jnp
import numpy as np
from jax.experimental import pallas as pl
from jax.experimental.pallas import tpu as pltpu

HL_SIZE = 256
INPUT_SIZE = 768
QA = 255
QB = 64
SCALE = 400

_OUT_SCALE = float(SCALE) / float(QA * QB)


def _round_up(x, m):
    return (x + m - 1) // m * m


def _choose_tile(B, block_m):
    """Static batch-tile selection (plain Python ints)."""
    block_m = max(32, (block_m // 32) * 32)      # int8 sublane alignment
    if B <= block_m:
        # Split a big single tile in two so v7x's 2 TensorCores both run
        # (no-op cost on v5e/v6e where the per-step overhead is well hidden).
        if B >= 1024:
            half = _round_up(-(-B // 2), 256)
            if half < B:
                return half
        return B                                 # full-dim block (constraint waived)
    return block_m


def nnue_kernel(outb_ref,                     # SMEM (1,) f32: out bias * scale
                xw_ref, xb_ref,               # (TM, 768) int8/bf16/f32 activations
                accw_ref,                     # (768, 256) bf16 accumulator W^T (resident)
                accb_ref,                     # (1, 256)  f32 accumulator bias
                outw_ref,                     # (2, 256)  f32 scaled out W (row0->white, row1->black)
                o_ref):                       # (TM, 1)   f32
    w = accw_ref[...]
    b = accb_ref[...]

    # Narrow-dtype activations are up-cast on the VPU right before the MXU dot;
    # features are exact 0/1 so bf16 is lossless on the activation side.
    xw = xw_ref[...].astype(jnp.bfloat16)
    xb = xb_ref[...].astype(jnp.bfloat16)

    white_acc = jnp.clip(
        jnp.dot(xw, w, preferred_element_type=jnp.float32) + b, 0.0, float(QA))
    black_acc = jnp.clip(
        jnp.dot(xb, w, preferred_element_type=jnp.float32) + b, 0.0, float(QA))

    # Output layer: rows were pre-arranged for side_to_move and pre-scaled by
    # SCALE/(QA*QB) in prepare_params, so this is a plain weighted row-reduction.
    w_white = outw_ref[0:1, :]
    w_black = outw_ref[1:2, :]
    o_ref[...] = (jnp.sum(white_acc * w_white, axis=-1, keepdims=True)
                  + jnp.sum(black_acc * w_black, axis=-1, keepdims=True)
                  + outb_ref[0])


def prepare_params(acc_w, acc_b, out_w, out_b):
    """One-time weight prep (model-load time, not per forward).
    acc_w: (256, 768), acc_b: (256,), out_w: (1, 512), out_b: (1,)."""
    acc_w_t = jnp.asarray(acc_w, jnp.float32).T.astype(jnp.bfloat16)     # (768, 256)
    acc_b_r = jnp.asarray(acc_b, jnp.float32).reshape(1, HL_SIZE)        # (1, 256)
    w = jnp.asarray(out_w, jnp.float32).reshape(2, HL_SIZE) * _OUT_SCALE  # (2, 256)
    # stm==0: concat=[white,black] -> white pairs with rows [0:256), black [256:512)
    # stm==1: concat=[black,white] -> white pairs with rows [256:512), black [0:256)
    out_w_stm = jnp.stack([w, w[::-1]])                                   # (2, 2, 256)
    out_b_s = jnp.asarray(out_b, jnp.float32).reshape(1) * _OUT_SCALE
    return acc_w_t, acc_b_r, out_w_stm, out_b_s


@functools.partial(jax.jit, static_argnums=(2,), static_argnames=("block_m",))
def nnue_forward(x_white, x_black, side_to_move,
                 acc_w_t, acc_b_r, out_w_stm, out_b_s, *, block_m=1024):
    """x_white/x_black: (B, 768) 0/1 features — int8 preferred (no wrapper cast
    or pad is performed; the kernel up-casts in VMEM).  side_to_move: static int."""
    B = x_white.shape[0]
    TM = _choose_tile(B, block_m)
    grid = (pl.cdiv(B, TM),)

    out_w_sel = out_w_stm[side_to_move]          # static-index slice, 2 KiB

    out = pl.pallas_call(
        nnue_kernel,
        out_shape=jax.ShapeDtypeStruct((B, 1), jnp.float32),
        grid=grid,
        in_specs=[
            pl.BlockSpec(memory_space=pltpu.SMEM),                    # out bias (scaled)
            pl.BlockSpec((TM, INPUT_SIZE), lambda i: (i, 0)),         # x_white tile
            pl.BlockSpec((TM, INPUT_SIZE), lambda i: (i, 0)),         # x_black tile
            pl.BlockSpec((INPUT_SIZE, HL_SIZE), lambda i: (0, 0)),    # acc W^T (resident)
            pl.BlockSpec((1, HL_SIZE), lambda i: (0, 0)),             # acc bias
            pl.BlockSpec((2, HL_SIZE), lambda i: (0, 0)),             # out W (scaled, stm-ordered)
        ],
        out_specs=pl.BlockSpec((TM, 1), lambda i: (i, 0)),
        compiler_params=pltpu.CompilerParams(
            dimension_semantics=("parallel",),
            vmem_limit_bytes=32 * 1024 * 1024),
    )(out_b_s, x_white, x_black, acc_w_t, acc_b_r, out_w_sel)
    return out


def nnue_forward_ref(x_white, x_black, side_to_move,
                     acc_w, acc_b, out_w, out_b):
    """Pure-JAX reference mirroring the PyTorch module."""
    wa = jnp.clip(x_white @ acc_w.T + acc_b, 0, QA)
    ba = jnp.clip(x_black @ acc_w.T + acc_b, 0, QA)
    if side_to_move == 0:
        comb = jnp.concatenate([wa, ba], axis=1)
    else:
        comb = jnp.concatenate([ba, wa], axis=1)
    return (comb @ out_w.T + out_b) * SCALE / (QA * QB)


def init_params(key):
    """Deterministic init matching the PyTorch module's __init__ shapes."""
    k1, k2, k3, k4 = jax.random.split(key, 4)
    acc_w = jax.random.normal(k1, (HL_SIZE, INPUT_SIZE), jnp.float32) * np.sqrt(2.0 / INPUT_SIZE)
    acc_b = jax.random.uniform(k2, (HL_SIZE,), jnp.float32,
                               -1.0 / np.sqrt(INPUT_SIZE), 1.0 / np.sqrt(INPUT_SIZE))
    out_w = jax.random.normal(k3, (1, 2 * HL_SIZE), jnp.float32) * np.sqrt(1.0 / (2 * HL_SIZE))
    out_b = jax.random.uniform(k4, (1,), jnp.float32,
                               -1.0 / np.sqrt(2 * HL_SIZE), 1.0 / np.sqrt(2 * HL_SIZE))
    return acc_w, acc_b, out_w, out_b


if __name__ == "__main__":
    key = jax.random.PRNGKey(0)
    kp, kw, kb = jax.random.split(key, 3)
    acc_w, acc_b, out_w, out_b = init_params(kp)
    prepared = prepare_params(acc_w, acc_b, out_w, out_b)

    B = 8
    # NNUE inputs are sparse 0/1 piece-feature vectors; store them as int8
    # upstream (halves / quarters activation HBM traffic into the kernel).
    x_white_i8 = jax.random.bernoulli(kw, 0.05, (B, INPUT_SIZE)).astype(jnp.int8)
    x_black_i8 = jax.random.bernoulli(kb, 0.05, (B, INPUT_SIZE)).astype(jnp.int8)

    x_white_f = x_white_i8.astype(jnp.float32)
    x_black_f = x_black_i8.astype(jnp.float32)
    # Reference consistent with the kernel's bf16 weight storage (tight check)
    # and the pure-f32 PyTorch semantics (loose sanity check).
    acc_w_bf = acc_w.astype(jnp.bfloat16).astype(jnp.float32)

    for side_to_move in (0, 1):
        out = nnue_forward(x_white_i8, x_black_i8, side_to_move, *prepared)
        out = jax.block_until_ready(out)

        ref_bf = nnue_forward_ref(x_white_f, x_black_f, side_to_move,
                                  acc_w_bf, acc_b, out_w, out_b)
        np.testing.assert_allclose(np.asarray(out), np.asarray(ref_bf),
                                   rtol=1e-3, atol=1e-4)

        ref_f32 = nnue_forward_ref(x_white_f, x_black_f, side_to_move,
                                   acc_w, acc_b, out_w, out_b)
        np.testing.assert_allclose(np.asarray(out), np.asarray(ref_f32),
                                   rtol=1e-1, atol=1e-3)

    # Exercise the no-pad multi-tile path (cdiv grid + partial last tile).
    B2 = 40
    kw2, kb2 = jax.random.split(jax.random.PRNGKey(1), 2)
    xw2 = jax.random.bernoulli(kw2, 0.05, (B2, INPUT_SIZE)).astype(jnp.int8)
    xb2 = jax.random.bernoulli(kb2, 0.05, (B2, INPUT_SIZE)).astype(jnp.int8)
    out2 = jax.block_until_ready(nnue_forward(xw2, xb2, 0, *prepared, block_m=32))
    ref2 = nnue_forward_ref(xw2.astype(jnp.float32), xb2.astype(jnp.float32), 0,
                            acc_w_bf, acc_b, out_w, out_b)
    np.testing.assert_allclose(np.asarray(out2), np.asarray(ref2),
                               rtol=1e-3, atol=1e-4)

    print("KERNEL_OK")
</pallas_src>

<mosaic_0001>
module attributes {stable_mosaic.version = 11 : i64} {
  func.func @nnue_kernel(%arg0: i32, %arg1: memref<1xf32, #tpu.memory_space<smem>>, %arg2: memref<8x768xi8, #tpu.memory_space<vmem>>, %arg3: memref<8x768xi8, #tpu.memory_space<vmem>>, %arg4: memref<768x256xbf16, #tpu.memory_space<vmem>>, %arg5: memref<1x256xf32, #tpu.memory_space<vmem>>, %arg6: memref<2x256xf32, #tpu.memory_space<vmem>>, %arg7: memref<8x1xf32, #tpu.memory_space<vmem>>) attributes {dimension_semantics = [#tpu.dimension_semantics<parallel>], iteration_bounds = array<i64: 1>, scalar_prefetch = 0 : i64, scratch_operands = 0 : i64, tpu.core_type = #tpu.core_type<tc>, window_params = [{transform_indices = @transform_0, window_bounds = array<i64: 1>}, {transform_indices = @transform_1, window_bounds = array<i64: 8, 768>}, {transform_indices = @transform_2, window_bounds = array<i64: 8, 768>}, {pipeline_mode = #tpu.pipeline_mode<synchronous>, transform_indices = @transform_3, window_bounds = array<i64: 768, 256>}, {pipeline_mode = #tpu.pipeline_mode<synchronous>, transform_indices = @transform_4, window_bounds = array<i64: 1, 256>}, {pipeline_mode = #tpu.pipeline_mode<synchronous>, transform_indices = @transform_5, window_bounds = array<i64: 2, 256>}, {transform_indices = @transform_6, window_bounds = array<i64: 8, 1>}]} {
    %c0 = arith.constant 0 : index
    %c0_0 = arith.constant 0 : index
    %0 = vector.load %arg4[%c0, %c0_0] : memref<768x256xbf16, #tpu.memory_space<vmem>>, vector<768x256xbf16>
    %c0_1 = arith.constant 0 : index
    %c0_2 = arith.constant 0 : index
    %1 = vector.load %arg5[%c0_1, %c0_2] : memref<1x256xf32, #tpu.memory_space<vmem>>, vector<1x256xf32>
    %c0_3 = arith.constant 0 : index
    %c0_4 = arith.constant 0 : index
    %2 = vector.load %arg2[%c0_3, %c0_4] : memref<8x768xi8, #tpu.memory_space<vmem>>, vector<8x768xi8>
    %3 = arith.sitofp %2 : vector<8x768xi8> to vector<8x768xbf16>
    %c0_5 = arith.constant 0 : index
    %c0_6 = arith.constant 0 : index
    %4 = vector.load %arg3[%c0_5, %c0_6] : memref<8x768xi8, #tpu.memory_space<vmem>>, vector<8x768xi8>
    %5 = arith.sitofp %4 : vector<8x768xi8> to vector<8x768xbf16>
    %cst = arith.constant dense<0.000000e+00> : vector<8x256xf32>
    %6 = tpu.matmul %3, %0, %cst {dimension_numbers = #tpu.dot_dimension_numbers<[1], [0], [0], [1], [0, 0, 1, 1], [], []>} : vector<8x768xbf16>, vector<768x256xbf16>, vector<8x256xf32> -> vector<8x256xf32>
    %7 = vector.broadcast %1 : vector<1x256xf32> to vector<8x256xf32>
    %8 = arith.addf %6, %7 : vector<8x256xf32>
    %cst_7 = arith.constant 0.000000e+00 : f32
    %cst_8 = arith.constant 2.550000e+02 : f32
    %9 = vector.broadcast %cst_7 : f32 to vector<8x256xf32>
    %10 = arith.maximumf %9, %8 : vector<8x256xf32>
    %11 = vector.broadcast %cst_8 : f32 to vector<8x256xf32>
    %12 = arith.minimumf %11, %10 : vector<8x256xf32>
    %cst_9 = arith.constant dense<0.000000e+00> : vector<8x256xf32>
    %13 = tpu.matmul %5, %0, %cst_9 {dimension_numbers = #tpu.dot_dimension_numbers<[1], [0], [0], [1], [0, 0, 1, 1], [], []>} : vector<8x768xbf16>, vector<768x256xbf16>, vector<8x256xf32> -> vector<8x256xf32>
    %14 = vector.broadcast %1 : vector<1x256xf32> to vector<8x256xf32>
    %15 = arith.addf %13, %14 : vector<8x256xf32>
    %cst_10 = arith.constant 0.000000e+00 : f32
    %cst_11 = arith.constant 2.550000e+02 : f32
    %16 = vector.broadcast %cst_10 : f32 to vector<8x256xf32>
    %17 = arith.maximumf %16, %15 : vector<8x256xf32>
    %18 = vector.broadcast %cst_11 : f32 to vector<8x256xf32>
    %19 = arith.minimumf %18, %17 : vector<8x256xf32>
    %c0_12 = arith.constant 0 : index
    %c0_13 = arith.constant 0 : index
    %20 = vector.load %arg6[%c0_12, %c0_13] : memref<2x256xf32, #tpu.memory_space<vmem>>, vector<1x256xf32>
    %c1 = arith.constant 1 : index
    %c0_14 = arith.constant 0 : index
    %21 = vector.load %arg6[%c1, %c0_14] : memref<2x256xf32, #tpu.memory_space<vmem>>, vector<1x256xf32>
    %22 = vector.broadcast %20 : vector<1x256xf32> to vector<8x256xf32>
    %23 = arith.mulf %12, %22 : vector<8x256xf32>
    %cst_15 = arith.constant dense<0.000000e+00> : vector<8xf32>
    %24 = vector.multi_reduction <add>, %23, %cst_15 [1] : vector<8x256xf32> to vector<8xf32>
    %25 = vector.shape_cast %24 : vector<8xf32> to vector<8x1xf32>
    %26 = vector.broadcast %21 : vector<1x256xf32> to vector<8x256xf32>
    %27 = arith.mulf %19, %26 : vector<8x256xf32>
    %cst_16 = arith.constant dense<0.000000e+00> : vector<8xf32>
    %28 = vector.multi_reduction <add>, %27, %cst_16 [1] : vector<8x256xf32> to vector<8xf32>
    %29 = vector.shape_cast %28 : vector<8xf32> to vector<8x1xf32>
    %30 = arith.addf %25, %29 : vector<8x1xf32>
    %c0_17 = arith.constant 0 : index
    %31 = memref.load %arg1[%c0_17] : memref<1xf32, #tpu.memory_space<smem>>
    %32 = vector.broadcast %31 : f32 to vector<8x1xf32>
    %33 = arith.addf %30, %32 : vector<8x1xf32>
    %c0_18 = arith.constant 0 : index
    %c0_19 = arith.constant 0 : index
    %34 = vector.load %arg7[%c0_18, %c0_19] : memref<8x1xf32, #tpu.memory_space<vmem>>, vector<8x1xf32>
    tpu.vector_store %arg7[%c0_18, %c0_19], %33 {strides = array<i32>} : memref<8x1xf32, #tpu.memory_space<vmem>>, vector<8x1xf32>,
    return
  }
  func.func @transform_0(%arg0: i32) -> i32 {
    %c0_i32 = arith.constant 0 : i32
    %c0_i32_0 = arith.constant 0 : i32
    return %c0_i32 : i32
  }
  func.func @transform_1(%arg0: i32) -> (i32, i32) {
    %c0_i32 = arith.constant 0 : i32
    %c0_i32_0 = arith.constant 0 : i32
    return %arg0, %c0_i32 : i32, i32
  }
  func.func @transform_2(%arg0: i32) -> (i32, i32) {
    %c0_i32 = arith.constant 0 : i32
    %c0_i32_0 = arith.constant 0 : i32
    return %arg0, %c0_i32 : i32, i32
  }
  func.func @transform_3(%arg0: i32) -> (i32, i32) {
    %c0_i32 = arith.constant 0 : i32
    %c0_i32_0 = arith.constant 0 : i32
    %c0_i32_1 = arith.constant 0 : i32
    return %c0_i32, %c0_i32_0 : i32, i32
  }
  func.func @transform_4(%arg0: i32) -> (i32, i32) {
    %c0_i32 = arith.constant 0 : i32
    %c0_i32_0 = arith.constant 0 : i32
    %c0_i32_1 = arith.constant 0 : i32
    return %c0_i32, %c0_i32_0 : i32, i32
  }
  func.func @transform_5(%arg0: i32) -> (i32, i32) {
    %c0_i32 = arith.constant 0 : i32
    %c0_i32_0 = arith.constant 0 : i32
    %c0_i32_1 = arith.constant 0 : i32
    return %c0_i32, %c0_i32_0 : i32, i32
  }
  func.func @transform_6(%arg0: i32) -> (i32, i32) {
    %c0_i32 = arith.constant 0 : i32
    %c0_i32_0 = arith.constant 0 : i32
    return %arg0, %c0_i32 : i32, i32
  }
}

</mosaic_0001>

<llo_original>
// kernel: nnue_forward.1
$region0: #{nnue_forward.1}
  #allocation0 [shape = 'u32[]', space=smem, size = 0x4, offset = 0x4, fixed_abs, tag = 'smem constant byte address 0x4 - core index']
  #allocation1 [shape = 'u32[144,128]{1,0:T(1,128)}', space=vmem, size = 0x12000, scoped, tag = 'internal scratch']
  #allocation2 [shape = 'f32[1]{0:T(128)S(6)}', space=smem, size = 0x200, scoped, tag = 'scoped memory for nnue_forward.1']
  %s0 = inlined_call_operand.<no memory space> [shape: f32[1], index: 0, kind: input, shape index: {}]
  %s1 = inlined_call_operand.hbm [shape: s8[8,768], index: 1, kind: input, shape index: {}]
  %s2 = inlined_call_operand.vmem [shape: s8[8,768], index: 2, kind: input, shape index: {}]
  %s3 = inlined_call_operand.hbm [shape: bf16[768,256], index: 3, kind: input, shape index: {}]
  %s4 = inlined_call_operand.vmem [shape: f32[1,256], index: 4, kind: input, shape index: {}]
  %s5 = inlined_call_operand.vmem [shape: f32[2,256], index: 5, kind: input, shape index: {}]
  %s6 = inlined_call_operand.vmem [shape: f32[8,1], index: 6, kind: output, shape index: {}]
  %s7 = sld [smem:[#allocation0]]
  $region42: #{nnue_forward.1} parent=0
    _
  %s9 = ssub.s32 1, %s7
  %s10 = scalar_select 0, %s9, %s7
  %11 = sst [smem:[#allocation2]] %s0
  $region1: #{nnue_forward.1} parent=0
    #allocation3 [shape = 'u8[6144]{0}', space=vmem, size = 0x1800, scoped, tag = 'input window, operand 1, single buffered']
    #allocation4 [shape = 's32[1]{0}', space=sflag, size = 0x4, scoped, tag = 'scoped memory for nnue_forward.1']
    #allocation5 [shape = 'u8[393216]{0}', space=vmem, size = 0x60000, scoped, tag = 'input window, operand 3, single buffered']
    #allocation6 [shape = 's32[1]{0}', space=sflag, size = 0x4, scoped, tag = 'scoped memory for nnue_forward.1']
    %12 = vsyncpa [#allocation4], 0
    %13 = vsyncpa [#allocation6], 0
    // Predicated region
    $region2: #{nnue_forward.1} parent=1 // pred_check
      _
    $region3: #{nnue_forward.1} parent=1 // pred_check_branch
      %15 = sbr.rel (0) target = $region5
    $region4: #{nnue_forward.1} parent=1 // pred_region
      _
    $region5: #{nnue_forward.1} parent=1 // pred_fallthru
      _
    // Predicated region
    $region6: #{nnue_forward.1} parent=1 // pred_check
      _
    $region7: #{nnue_forward.1} parent=1 // pred_check_branch
      %17 = sbr.rel (0) target = $region9
    $region8: #{nnue_forward.1} parent=1 // pred_region
      %s19 = ssub.s32 192, 192
      %20 = vsyncadd [#allocation4], %s19
      %s22 = sshll.u32 [#allocation3], 4
      %s23 = int_to_ptr.vmem [resolvable:$true] %s22
      %25 = dma.hbm_to_vmem [thread:$0]  %s1, 192, %s23, [#allocation4]
    $region9: #{nnue_forward.1} parent=1 // pred_fallthru
      _
    // Predicated region
    $region10: #{nnue_forward.1} parent=1 // pred_check
      _
    $region11: #{nnue_forward.1} parent=1 // pred_check_branch
      %27 = sbr.rel (0) target = $region13
    $region12: #{nnue_forward.1} parent=1 // pred_region
      _
    $region13: #{nnue_forward.1} parent=1 // pred_fallthru
      _
    // Predicated region
    $region14: #{nnue_forward.1} parent=1 // pred_check
      _
    $region15: #{nnue_forward.1} parent=1 // pred_check_branch
      %29 = sbr.rel (0) target = $region17
    $region16: #{nnue_forward.1} parent=1 // pred_region
      %s31 = ssub.s32 12288, 12288
      %32 = vsyncadd [#allocation6], %s31
      %s33 = sshll.u32 [#allocation5], 4
      %s34 = int_to_ptr.vmem [resolvable:$true] %s33
      %39 = dma.hbm_to_vmem [thread:$0]  %s3, 12288, %s34, [#allocation6], 128, 128, 8
    $region17: #{nnue_forward.1} parent=1 // pred_fallthru
      _
    // Predicated region
    $region18: #{nnue_forward.1} parent=1 // pred_check
      _
    $region19: #{nnue_forward.1} parent=1 // pred_check_branch
      %41 = sbr.rel (0) target = $region21
    $region20: #{nnue_forward.1} parent=1 // pred_region
      _
    $region21: #{nnue_forward.1} parent=1 // pred_fallthru
      _
    // Predicated region
    $region22: #{nnue_forward.1} parent=1 // pred_check
      _
    $region23: #{nnue_forward.1} parent=1 // pred_check_branch
      %43 = sbr.rel (0) target = $region25
    $region24: #{nnue_forward.1} parent=1 // pred_region
      _
    $region25: #{nnue_forward.1} parent=1 // pred_fallthru
      _
    // Predicated region
    $region26: #{nnue_forward.1} parent=1 // pred_check
      _
    $region27: #{nnue_forward.1} parent=1 // pred_check_branch
      %45 = sbr.rel (0) target = $region29
    $region28: #{nnue_forward.1} parent=1 // pred_region
      %46 = dma.done [#allocation4], 192
    $region29: #{nnue_forward.1} parent=1 // pred_fallthru
      _
    // Predicated region
    $region30: #{nnue_forward.1} parent=1 // pred_check
      _
    $region31: #{nnue_forward.1} parent=1 // pred_check_branch
      %48 = sbr.rel (0) target = $region33
    $region32: #{nnue_forward.1} parent=1 // pred_region
      %49 = dma.done [#allocation6], 12288
    $region33: #{nnue_forward.1} parent=1 // pred_fallthru
      _
    %v50 = vld [vmem:[#allocation5] sm:$0xff]
    %v51 = vld [vmem:[#allocation5 + $0x8] sm:$0xff]
    %v52 = vld [vmem:[#allocation5 + $0x10] sm:$0xff]
    %v53 = vld [vmem:[#allocation5 + $0x18] sm:$0xff]
    %v54 = vld [vmem:[#allocation5 + $0x20] sm:$0xff]
    %v55 = vld [vmem:[#allocation5 + $0x28] sm:$0xff]
    %v56 = vld [vmem:[#allocation5 + $0x30] sm:$0xff]
    %v57 = vld [vmem:[#allocation5 + $0x38] sm:$0xff]
    %v58 = vld [vmem:[#allocation5 + $0x40] sm:$0xff]
    %v59 = vld [vmem:[#allocation5 + $0x48] sm:$0xff]
    %v60 = vld [vmem:[#allocation5 + $0x50] sm:$0xff]
    %v61 = vld [vmem:[#allocation5 + $0x58] sm:$0xff]
    %v62 = vld [vmem:[#allocation5 + $0x60] sm:$0xff]
    %v63 = vld [vmem:[#allocation5 + $0x68] sm:$0xff]
    %v64 = vld [vmem:[#allocation5 + $0x70] sm:$0xff]
    %v65 = vld [vmem:[#allocation5 + $0x78] sm:$0xff]
    %v66 = vld [vmem:[#allocation5 + $0x80] sm:$0xff]
    %v67 = vld [vmem:[#allocation5 + $0x88] sm:$0xff]
    %v68 = vld [vmem:[#allocation5 + $0x90] sm:$0xff]
    %v69 = vld [vmem:[#allocation5 + $0x98] sm:$0xff]
    %v70 = vld [vmem:[#allocation5 + $0xa0] sm:$0xff]
    %v71 = vld [vmem:[#allocation5 + $0xa8] sm:$0xff]
    %v72 = vld [vmem:[#allocation5 + $0xb0] sm:$0xff]
    %v73 = vld [vmem:[#allocation5 + $0xb8] sm:$0xff]
    %v74 = vld [vmem:[#allocation5 + $0xc0] sm:$0xff]
    %v75 = vld [vmem:[#allocation5 + $0xc8] sm:$0xff]
    %v76 = vld [vmem:[#allocation5 + $0xd0] sm:$0xff]
    %v77 = vld [vmem:[#allocation5 + $0xd8] sm:$0xff]
    %v78 = vld [vmem:[#allocation5 + $0xe0] sm:$0xff]
    %v79 = vld [vmem:[#allocation5 + $0xe8] sm:$0xff]
    %v80 = vld [vmem:[#allocation5 + $0xf0] sm:$0xff]
    %v81 = vld [vmem:[#allocation5 + $0xf8] sm:$0xff]
    %v82 = vld [vmem:[#allocation5 + $0x100] sm:$0xff]
    %v83 = vld [vmem:[#allocation5 + $0x108] sm:$0xff]
    %v84 = vld [vmem:[#allocation5 + $0x110] sm:$0xff]
    %v85 = vld [vmem:[#allocation5 + $0x118] sm:$0xff]
    %v86 = vld [vmem:[#allocation5 + $0x120] sm:$0xff]
    %v87 = vld [vmem:[#allocation5 + $0x128] sm:$0xff]
    %v88 = vld [vmem:[#allocation5 + $0x130] sm:$0xff]
    %v89 = vld [vmem:[#allocation5 + $0x138] sm:$0xff]
    %v90 = vld [vmem:[#allocation5 + $0x140] sm:$0xff]
    %v91 = vld [vmem:[#allocation5 + $0x148] sm:$0xff]
    %v92 = vld [vmem:[#allocation5 + $0x150] sm:$0xff]
    %v93 = vld [vmem:[#allocation5 + $0x158] sm:$0xff]
    %v94 = vld [vmem:[#allocation5 + $0x160] sm:$0xff]
    %v95 = vld [vmem:[#allocation5 + $0x168] sm:$0xff]
    %v96 = vld [vmem:[#allocation5 + $0x170] sm:$0xff]
    %v97 = vld [vmem:[#allocation5 + $0x178] sm:$0xff]
    %v98 = vld [vmem:[#allocation5 + $0x180] sm:$0xff]
    %v99 = vld [vmem:[#allocation5 + $0x188] sm:$0xff]
    %v100 = vld [vmem:[#allocation5 + $0x190] sm:$0xff]
    %v101 = vld [vmem:[#allocation5 + $0x198] sm:$0xff]
    %v102 = vld [vmem:[#allocation5 + $0x1a0] sm:$0xff]
    %v103 = vld [vmem:[#allocation5 + $0x1a8] sm:$0xff]
    %v104 = vld [vmem:[#allocation5 + $0x1b0] sm:$0xff]
    %v105 = vld [vmem:[#allocation5 + $0x1b8] sm:$0xff]
    %v106 = vld [vmem:[#allocation5 + $0x1c0] sm:$0xff]
    %v107 = vld [vmem:[#allocation5 + $0x1c8] sm:$0xff]
    %v108 = vld [vmem:[#allocation5 + $0x1d0] sm:$0xff]
    %v109 = vld [vmem:[#allocation5 + $0x1d8] sm:$0xff]
    %v110 = vld [vmem:[#allocation5 + $0x1e0] sm:$0xff]
    %v111 = vld [vmem:[#allocation5 + $0x1e8] sm:$0xff]
    %v112 = vld [vmem:[#allocation5 + $0x1f0] sm:$0xff]
    %v113 = vld [vmem:[#allocation5 + $0x1f8] sm:$0xff]
    %v114 = vld [vmem:[#allocation5 + $0x200] sm:$0xff]
    %v115 = vld [vmem:[#allocation5 + $0x208] sm:$0xff]
    %v116 = vld [vmem:[#allocation5 + $0x210] sm:$0xff]
    %v117 = vld [vmem:[#allocation5 + $0x218] sm:$0xff]
    %v118 = vld [vmem:[#allocation5 + $0x220] sm:$0xff]
    %v119 = vld [vmem:[#allocation5 + $0x228] sm:$0xff]
    %v120 = vld [vmem:[#allocation5 + $0x230] sm:$0xff]
    %v121 = vld [vmem:[#allocation5 + $0x238] sm:$0xff]
    %v122 = vld [vmem:[#allocation5 + $0x240] sm:$0xff]
    %v123 = vld [vmem:[#allocation5 + $0x248] sm:$0xff]
    %v124 = vld [vmem:[#allocation5 + $0x250] sm:$0xff]
    %v125 = vld [vmem:[#allocation5 + $0x258] sm:$0xff]
    %v126 = vld [vmem:[#allocation5 + $0x260] sm:$0xff]
    %v127 = vld [vmem:[#allocation5 + $0x268] sm:$0xff]
    %v128 = vld [vmem:[#allocation5 + $0x270] sm:$0xff]
    %v129 = vld [vmem:[#allocation5 + $0x278] sm:$0xff]
    %v130 = vld [vmem:[#allocation5 + $0x280] sm:$0xff]
    %v131 = vld [vmem:[#allocation5 + $0x288] sm:$0xff]
    %v132 = vld [vmem:[#allocation5 + $0x290] sm:$0xff]
    %v133 = vld [vmem:[#allocation5 + $0x298] sm:$0xff]
    %v134 = vld [vmem:[#allocation5 + $0x2a0] sm:$0xff]
    %v135 = vld [vmem:[#allocation5 + $0x2a8] sm:$0xff]
    %v136 = vld [vmem:[#allocation5 + $0x2b0] sm:$0xff]
    %v137 = vld [vmem:[#allocation5 + $0x2b8] sm:$0xff]
    %v138 = vld [vmem:[#allocation5 + $0x2c0] sm:$0xff]
    %v139 = vld [vmem:[#allocation5 + $0x2c8] sm:$0xff]
    %v140 = vld [vmem:[#allocation5 + $0x2d0] sm:$0xff]
    %v141 = vld [vmem:[#allocation5 + $0x2d8] sm:$0xff]
    %v142 = vld [vmem:[#allocation5 + $0x2e0] sm:$0xff]
    %v143 = vld [vmem:[#allocation5 + $0x2e8] sm:$0xff]
    %v144 = vld [vmem:[#allocation5 + $0x2f0] sm:$0xff]
    %v145 = vld [vmem:[#allocation5 + $0x2f8] sm:$0xff]
    %v146 = vld [vmem:[%s4] sm:$0x3]
    %v147 = vld [vmem:[#allocation3] sm:$0xff]
    %v148 = vld [vmem:[#allocation3 + $0x8] sm:$0xf]
    %v149 = vunpack.c.l.s8.bf16 %v147
    %v150 = vunpack.c.h.s8.bf16 %v147
    %v151 = vunpack.c.l.s8.bf16 %v148
    %v152 = vld [vmem:[%s2] sm:$0xff]
    %v153 = vld [vmem:[%s2 + $0x8] sm:$0xf]
    %v154 = vunpack.c.l.s8.bf16 %v152
    %v155 = vunpack.c.h.s8.bf16 %v152
    %v156 = vunpack.c.l.s8.bf16 %v153
    %v158 = vlaneseq
    %v159 = vshrl.u32 %v158, 7
    %v160 = vsub.s32 0, %v159
    %v161 = vrot.slane %v146, %v160
    %v162 = vlaneseq
    %v163 = vshrl.u32 %v162, 7
    %v164 = vsub.s32 1, %v163
    %v165 = vrot.slane %v146, %v164
    %v171 = vunpack.c.l.b16 %v149
    %v172 = vunpack.c.h.b16 %v149
    %v173 = vunpack.c.l.b16 %v150
    %v174 = vunpack.c.h.b16 %v150
    %v175 = vunpack.c.l.b16 %v151
    %v176 = vunpack.c.h.b16 %v151
    %v177 = vpack.c.b16 %v171, %v171
    %v178 = vpack.c.b16 %v172, %v172
    %v179 = vpack.c.b16 %v173, %v173
    %v180 = vpack.c.b16 %v174, %v174
    %v181 = vpack.c.b16 %v175, %v175
    %v182 = vpack.c.b16 %v176, %v176
    %v285 = vunpack.c.l.b16 %v50
    %v286 = vunpack.c.h.b16 %v50
    %v287 = vunpack.c.l.b16 %v51
    %v288 = vunpack.c.h.b16 %v51
    %v289 = vunpack.c.l.b16 %v52
    %v290 = vunpack.c.h.b16 %v52
    %v291 = vunpack.c.l.b16 %v53
    %v292 = vunpack.c.h.b16 %v53
    %v293 = vunpack.c.l.b16 %v54
    %v294 = vunpack.c.h.b16 %v54
    %v295 = vunpack.c.l.b16 %v55
    %v296 = vunpack.c.h.b16 %v55
    %v297 = vunpack.c.l.b16 %v56
    %v298 = vunpack.c.h.b16 %v56
    %v299 = vunpack.c.l.b16 %v57
    %v300 = vunpack.c.h.b16 %v57
    %v301 = vunpack.c.l.b16 %v58
    %v302 = vunpack.c.h.b16 %v58
    %v303 = vunpack.c.l.b16 %v59
    %v304 = vunpack.c.h.b16 %v59
    %v305 = vunpack.c.l.b16 %v60
    %v306 = vunpack.c.h.b16 %v60
    %v307 = vunpack.c.l.b16 %v61
    %v308 = vunpack.c.h.b16 %v61
    %v309 = vunpack.c.l.b16 %v62
    %v310 = vunpack.c.h.b16 %v62
    %v311 = vunpack.c.l.b16 %v63
    %v312 = vunpack.c.h.b16 %v63
    %v313 = vunpack.c.l.b16 %v64
    %v314 = vunpack.c.h.b16 %v64
    %v315 = vunpack.c.l.b16 %v65
    %v316 = vunpack.c.h.b16 %v65
    %v317 = vunpack.c.l.b16 %v66
    %v318 = vunpack.c.h.b16 %v66
    %v319 = vunpack.c.l.b16 %v67
    %v320 = vunpack.c.h.b16 %v67
    %v321 = vunpack.c.l.b16 %v68
    %v322 = vunpack.c.h.b16 %v68
    %v323 = vunpack.c.l.b16 %v69
    %v324 = vunpack.c.h.b16 %v69
    %v325 = vunpack.c.l.b16 %v70
    %v326 = vunpack.c.h.b16 %v70
    %v327 = vunpack.c.l.b16 %v71
    %v328 = vunpack.c.h.b16 %v71
    %v329 = vunpack.c.l.b16 %v72
    %v330 = vunpack.c.h.b16 %v72
    %v331 = vunpack.c.l.b16 %v73
    %v332 = vunpack.c.h.b16 %v73
    %v333 = vunpack.c.l.b16 %v74
    %v334 = vunpack.c.h.b16 %v74
    %v335 = vunpack.c.l.b16 %v75
    %v336 = vunpack.c.h.b16 %v75
    %v337 = vunpack.c.l.b16 %v76
    %v338 = vunpack.c.h.b16 %v76
    %v339 = vunpack.c.l.b16 %v77
    %v340 = vunpack.c.h.b16 %v77
    %v341 = vunpack.c.l.b16 %v78
    %v342 = vunpack.c.h.b16 %v78
    %v343 = vunpack.c.l.b16 %v79
    %v344 = vunpack.c.h.b16 %v79
    %v345 = vunpack.c.l.b16 %v80
    %v346 = vunpack.c.h.b16 %v80
    %v347 = vunpack.c.l.b16 %v81
    %v348 = vunpack.c.h.b16 %v81
    %v349 = vunpack.c.l.b16 %v82
    %v350 = vunpack.c.h.b16 %v82
    %v351 = vunpack.c.l.b16 %v83
    %v352 = vunpack.c.h.b16 %v83
    %v353 = vunpack.c.l.b16 %v84
    %v354 = vunpack.c.h.b16 %v84
    %v355 = vunpack.c.l.b16 %v85
    %v356 = vunpack.c.h.b16 %v85
    %v357 = vunpack.c.l.b16 %v86
    %v358 = vunpack.c.h.b16 %v86
    %v359 = vunpack.c.l.b16 %v87
    %v360 = vunpack.c.h.b16 %v87
    %v361 = vunpack.c.l.b16 %v88
    %v362 = vunpack.c.h.b16 %v88
    %v363 = vunpack.c.l.b16 %v89
    %v364 = vunpack.c.h.b16 %v89
    %v365 = vunpack.c.l.b16 %v90
    %v366 = vunpack.c.h.b16 %v90
    %v367 = vunpack.c.l.b16 %v91
    %v368 = vunpack.c.h.b16 %v91
    %v369 = vunpack.c.l.b16 %v92
    %v370 = vunpack.c.h.b16 %v92
    %v371 = vunpack.c.l.b16 %v93
    %v372 = vunpack.c.h.b16 %v93
    %v373 = vunpack.c.l.b16 %v94
    %v374 = vunpack.c.h.b16 %v94
    %v375 = vunpack.c.l.b16 %v95
    %v376 = vunpack.c.h.b16 %v95
    %v377 = vunpack.c.l.b16 %v96
    %v378 = vunpack.c.h.b16 %v96
    %v379 = vunpack.c.l.b16 %v97
    %v380 = vunpack.c.h.b16 %v97
    %v381 = vunpack.c.l.b16 %v98
    %v382 = vunpack.c.h.b16 %v98
    %v383 = vunpack.c.l.b16 %v99
    %v384 = vunpack.c.h.b16 %v99
    %v385 = vunpack.c.l.b16 %v100
    %v386 = vunpack.c.h.b16 %v100
    %v387 = vunpack.c.l.b16 %v101
    %v388 = vunpack.c.h.b16 %v101
    %v389 = vunpack.c.l.b16 %v102
    %v390 = vunpack.c.h.b16 %v102
    %v391 = vunpack.c.l.b16 %v103
    %v392 = vunpack.c.h.b16 %v103
    %v393 = vunpack.c.l.b16 %v104
    %v394 = vunpack.c.h.b16 %v104
    %v395 = vunpack.c.l.b16 %v105
    %v396 = vunpack.c.h.b16 %v105
    %v397 = vunpack.c.l.b16 %v106
    %v398 = vunpack.c.h.b16 %v106
    %v399 = vunpack.c.l.b16 %v107
    %v400 = vunpack.c.h.b16 %v107
    %v401 = vunpack.c.l.b16 %v108
    %v402 = vunpack.c.h.b16 %v108
    %v403 = vunpack.c.l.b16 %v109
    %v404 = vunpack.c.h.b16 %v109
    %v405 = vunpack.c.l.b16 %v110
    %v406 = vunpack.c.h.b16 %v110
    %v407 = vunpack.c.l.b16 %v111
    %v408 = vunpack.c.h.b16 %v111
    %v409 = vunpack.c.l.b16 %v112
    %v410 = vunpack.c.h.b16 %v112
    %v411 = vunpack.c.l.b16 %v113
    %v412 = vunpack.c.h.b16 %v113
    %v413 = vunpack.c.l.b16 %v114
    %v414 = vunpack.c.h.b16 %v114
    %v415 = vunpack.c.l.b16 %v115
    %v416 = vunpack.c.h.b16 %v115
    %v417 = vunpack.c.l.b16 %v116
    %v418 = vunpack.c.h.b16 %v116
    %v419 = vunpack.c.l.b16 %v117
    %v420 = vunpack.c.h.b16 %v117
    %v421 = vunpack.c.l.b16 %v118
    %v422 = vunpack.c.h.b16 %v118
    %v423 = vunpack.c.l.b16 %v119
    %v424 = vunpack.c.h.b16 %v119
    %v425 = vunpack.c.l.b16 %v120
    %v426 = vunpack.c.h.b16 %v120
    %v427 = vunpack.c.l.b16 %v121
    %v428 = vunpack.c.h.b16 %v121
    %v429 = vunpack.c.l.b16 %v122
    %v430 = vunpack.c.h.b16 %v122
    %v431 = vunpack.c.l.b16 %v123
    %v432 = vunpack.c.h.b16 %v123
    %v433 = vunpack.c.l.b16 %v124
    %v434 = vunpack.c.h.b16 %v124
    %v435 = vunpack.c.l.b16 %v125
    %v436 = vunpack.c.h.b16 %v125
    %v437 = vunpack.c.l.b16 %v126
    %v438 = vunpack.c.h.b16 %v126
    %v439 = vunpack.c.l.b16 %v127
    %v440 = vunpack.c.h.b16 %v127
    %v441 = vunpack.c.l.b16 %v128
    %v442 = vunpack.c.h.b16 %v128
    %v443 = vunpack.c.l.b16 %v129
    %v444 = vunpack.c.h.b16 %v129
    %v445 = vunpack.c.l.b16 %v130
    %v446 = vunpack.c.h.b16 %v130
    %v447 = vunpack.c.l.b16 %v131
    %v448 = vunpack.c.h.b16 %v131
    %v449 = vunpack.c.l.b16 %v132
    %v450 = vunpack.c.h.b16 %v132
    %v451 = vunpack.c.l.b16 %v133
    %v452 = vunpack.c.h.b16 %v133
    %v453 = vunpack.c.l.b16 %v134
    %v454 = vunpack.c.h.b16 %v134
    %v455 = vunpack.c.l.b16 %v135
    %v456 = vunpack.c.h.b16 %v135
    %v457 = vunpack.c.l.b16 %v136
    %v458 = vunpack.c.h.b16 %v136
    %v459 = vunpack.c.l.b16 %v137
    %v460 = vunpack.c.h.b16 %v137
    %v461 = vunpack.c.l.b16 %v138
    %v462 = vunpack.c.h.b16 %v138
    %v463 = vunpack.c.l.b16 %v139
    %v464 = vunpack.c.h.b16 %v139
    %v465 = vunpack.c.l.b16 %v140
    %v466 = vunpack.c.h.b16 %v140
    %v467 = vunpack.c.l.b16 %v141
    %v468 = vunpack.c.h.b16 %v141
    %v469 = vunpack.c.l.b16 %v142
    %v470 = vunpack.c.h.b16 %v142
    %v471 = vunpack.c.l.b16 %v143
    %v472 = vunpack.c.h.b16 %v143
    %v473 = vunpack.c.l.b16 %v144
    %v474 = vunpack.c.h.b16 %v144
    %v475 = vunpack.c.l.b16 %v145
    %v476 = vunpack.c.h.b16 %v145
    %v477 = vpack.c.b16 %v287, %v285
    %v478 = vpack.c.b16 %v288, %v286
    %v479 = vpack.c.b16 %v291, %v289
    %v480 = vpack.c.b16 %v292, %v290
    %v481 = vpack.c.b16 %v295, %v293
    %v482 = vpack.c.b16 %v296, %v294
    %v483 = vpack.c.b16 %v299, %v297
    %v484 = vpack.c.b16 %v300, %v298
    %v485 = vpack.c.b16 %v303, %v301
    %v486 = vpack.c.b16 %v304, %v302
    %v487 = vpack.c.b16 %v307, %v305
    %v488 = vpack.c.b16 %v308, %v306
    %v489 = vpack.c.b16 %v311, %v309
    %v490 = vpack.c.b16 %v312, %v310
    %v491 = vpack.c.b16 %v315, %v313
    %v492 = vpack.c.b16 %v316, %v314
    %v493 = vpack.c.b16 %v319, %v317
    %v494 = vpack.c.b16 %v320, %v318
    %v495 = vpack.c.b16 %v323, %v321
    %v496 = vpack.c.b16 %v324, %v322
    %v497 = vpack.c.b16 %v327, %v325
    %v498 = vpack.c.b16 %v328, %v326
    %v499 = vpack.c.b16 %v331, %v329
    %v500 = vpack.c.b16 %v332, %v330
    %v501 = vpack.c.b16 %v335, %v333
    %v502 = vpack.c.b16 %v336, %v334
    %v503 = vpack.c.b16 %v339, %v337
    %v504 = vpack.c.b16 %v340, %v338
    %v505 = vpack.c.b16 %v343, %v341
    %v506 = vpack.c.b16 %v344, %v342
    %v507 = vpack.c.b16 %v347, %v345
    %v508 = vpack.c.b16 %v348, %v346
    %v509 = vpack.c.b16 %v351, %v349
    %v510 = vpack.c.b16 %v352, %v350
    %v511 = vpack.c.b16 %v355, %v353
    %v512 = vpack.c.b16 %v356, %v354
    %v513 = vpack.c.b16 %v359, %v357
    %v514 = vpack.c.b16 %v360, %v358
    %v515 = vpack.c.b16 %v363, %v361
    %v516 = vpack.c.b16 %v364, %v362
    %v517 = vpack.c.b16 %v367, %v365
    %v518 = vpack.c.b16 %v368, %v366
    %v519 = vpack.c.b16 %v371, %v369
    %v520 = vpack.c.b16 %v372, %v370
    %v521 = vpack.c.b16 %v375, %v373
    %v522 = vpack.c.b16 %v376, %v374
    %v523 = vpack.c.b16 %v379, %v377
    %v524 = vpack.c.b16 %v380, %v378
    %v525 = vpack.c.b16 %v383, %v381
    %v526 = vpack.c.b16 %v384, %v382
    %v527 = vpack.c.b16 %v387, %v385
    %v528 = vpack.c.b16 %v388, %v386
    %v529 = vpack.c.b16 %v391, %v389
    %v530 = vpack.c.b16 %v392, %v390
    %v531 = vpack.c.b16 %v395, %v393
    %v532 = vpack.c.b16 %v396, %v394
    %v533 = vpack.c.b16 %v399, %v397
    %v534 = vpack.c.b16 %v400, %v398
    %v535 = vpack.c.b16 %v403, %v401
    %v536 = vpack.c.b16 %v404, %v402
    %v537 = vpack.c.b16 %v407, %v405
    %v538 = vpack.c.b16 %v408, %v406
    %v539 = vpack.c.b16 %v411, %v409
    %v540 = vpack.c.b16 %v412, %v410
    %v541 = vpack.c.b16 %v415, %v413
    %v542 = vpack.c.b16 %v416, %v414
    %v543 = vpack.c.b16 %v419, %v417
    %v544 = vpack.c.b16 %v420, %v418
    %v545 = vpack.c.b16 %v423, %v421
    %v546 = vpack.c.b16 %v424, %v422
    %v547 = vpack.c.b16 %v427, %v425
    %v548 = vpack.c.b16 %v428, %v426
    %v549 = vpack.c.b16 %v431, %v429
    %v550 = vpack.c.b16 %v432, %v430
    %v551 = vpack.c.b16 %v435, %v433
    %v552 = vpack.c.b16 %v436, %v434
    %v553 = vpack.c.b16 %v439, %v437
    %v554 = vpack.c.b16 %v440, %v438
    %v555 = vpack.c.b16 %v443, %v441
    %v556 = vpack.c.b16 %v444, %v442
    %v557 = vpack.c.b16 %v447, %v445
    %v558 = vpack.c.b16 %v448, %v446
    %v559 = vpack.c.b16 %v451, %v449
    %v560 = vpack.c.b16 %v452, %v450
    %v561 = vpack.c.b16 %v455, %v453
    %v562 = vpack.c.b16 %v456, %v454
    %v563 = vpack.c.b16 %v459, %v457
    %v564 = vpack.c.b16 %v460, %v458
    %v565 = vpack.c.b16 %v463, %v461
    %v566 = vpack.c.b16 %v464, %v462
    %v567 = vpack.c.b16 %v467, %v465
    %v568 = vpack.c.b16 %v468, %v466
    %v569 = vpack.c.b16 %v471, %v469
    %v570 = vpack.c.b16 %v472, %v470
    %v571 = vpack.c.b16 %v475, %v473
    %v572 = vpack.c.b16 %v476, %v474
    %669 = vmatprep.subr.bf16.mxu0 %v478
    %670 = vmatpush1.bf16.msra.mxu0 %v477
    %671 = vmatprep.subr.bf16.mxu0 %v480
    %672 = vmatpush1.bf16.msra.mxu0 %v479
    %673 = vmatprep.subr.bf16.mxu0 %v482
    %674 = vmatpush1.bf16.msra.mxu0 %v481
    %675 = vmatprep.subr.bf16.mxu0 %v484
    %676 = vmatpush1.bf16.msra.mxu0 %v483
    %677 = vmatprep.subr.bf16.mxu0 %v486
    %678 = vmatpush1.bf16.msra.mxu0 %v485
    %679 = vmatprep.subr.bf16.mxu0 %v488
    %680 = vmatpush1.bf16.msra.mxu0 %v487
    %681 = vmatprep.subr.bf16.mxu0 %v490
    %682 = vmatpush1.bf16.msra.mxu0 %v489
    %683 = vmatprep.subr.bf16.mxu0 %v492
    %684 = vmatpush1.bf16.msra.mxu0 %v491
    %685 = vmatprep.subr.bf16.mxu0 %v494
    %686 = vmatpush1.bf16.msra.mxu0 %v493
    %687 = vmatprep.subr.bf16.mxu0 %v496
    %688 = vmatpush1.bf16.msra.mxu0 %v495
    %689 = vmatprep.subr.bf16.mxu0 %v498
    %690 = vmatpush1.bf16.msra.mxu0 %v497
    %691 = vmatprep.subr.bf16.mxu0 %v500
    %692 = vmatpush1.bf16.msra.mxu0 %v499
    %693 = vmatprep.subr.bf16.mxu0 %v502
    %694 = vmatpush1.bf16.msra.mxu0 %v501
    %695 = vmatprep.subr.bf16.mxu0 %v504
    %696 = vmatpush1.bf16.msra.mxu0 %v503
    %697 = vmatprep.subr.bf16.mxu0 %v506
    %698 = vmatpush1.bf16.msra.mxu0 %v505
    %699 = vmatprep.subr.bf16.mxu0 %v508
    %700 = vmatpush1.bf16.msra.mxu0 %v507
    %701 = vmatprep.mubr.bf16.mxu0 %v178
    %702 = vmatmul.mubr.bf16.gmra.mrb[0].mxu0 %v177
    %v703 = vpop.f32.mrb[0].mxu0
    %v704 = vadd.f32 %v161, %v703
    %v705 = vpop.f32.mrb[0].mxu0
    %v706 = vadd.f32 %v165, %v705
    %v707 = vpop.f32.mrb[0].mxu0
    %v708 = vpop.f32.mrb[0].mxu0
    %709 = vdwg.mxu0
    %710 = vmatprep.subr.bf16.mxu0 %v510
    %711 = vmatpush1.bf16.msra.mxu0 %v509
    %712 = vmatprep.subr.bf16.mxu0 %v512
    %713 = vmatpush1.bf16.msra.mxu0 %v511
    %714 = vmatprep.subr.bf16.mxu0 %v514
    %715 = vmatpush1.bf16.msra.mxu0 %v513
    %716 = vmatprep.subr.bf16.mxu0 %v516
    %717 = vmatpush1.bf16.msra.mxu0 %v515
    %718 = vmatprep.subr.bf16.mxu0 %v518
    %719 = vmatpush1.bf16.msra.mxu0 %v517
    %720 = vmatprep.subr.bf16.mxu0 %v520
    %721 = vmatpush1.bf16.msra.mxu0 %v519
    %722 = vmatprep.subr.bf16.mxu0 %v522
    %723 = vmatpush1.bf16.msra.mxu0 %v521
    %724 = vmatprep.subr.bf16.mxu0 %v524
    %725 = vmatpush1.bf16.msra.mxu0 %v523
    %726 = vmatprep.subr.bf16.mxu0 %v526
    %727 = vmatpush1.bf16.msra.mxu0 %v525
    %728 = vmatprep.subr.bf16.mxu0 %v528
    %729 = vmatpush1.bf16.msra.mxu0 %v527
    %730 = vmatprep.subr.bf16.mxu0 %v530
    %731 = vmatpush1.bf16.msra.mxu0 %v529
    %732 = vmatprep.subr.bf16.mxu0 %v532
    %733 = vmatpush1.bf16.msra.mxu0 %v531
    %734 = vmatprep.subr.bf16.mxu0 %v534
    %735 = vmatpush1.bf16.msra.mxu0 %v533
    %736 = vmatprep.subr.bf16.mxu0 %v536
    %737 = vmatpush1.bf16.msra.mxu0 %v535
    %738 = vmatprep.subr.bf16.mxu0 %v538
    %739 = vmatpush1.bf16.msra.mxu0 %v537
    %740 = vmatprep.subr.bf16.mxu0 %v540
    %741 = vmatpush1.bf16.msra.mxu0 %v539
    %742 = vmatprep.mubr.bf16.mxu0 %v180
    %743 = vmatmul.mubr.bf16.gmra.mrb[0].mxu0 %v179
    %v744 = vpop.f32.mrb[0].mxu0
    %v745 = vadd.f32 %v704, %v744
    %v746 = vpop.f32.mrb[0].mxu0
    %v747 = vadd.f32 %v706, %v746
    %v748 = vpop.f32.mrb[0].mxu0
    %v749 = vpop.f32.mrb[0].mxu0
    %750 = vdwg.mxu0
    %751 = vmatprep.subr.bf16.mxu0 %v542
    %752 = vmatpush1.bf16.msra.mxu0 %v541
    %753 = vmatprep.subr.bf16.mxu0 %v544
    %754 = vmatpush1.bf16.msra.mxu0 %v543
    %755 = vmatprep.subr.bf16.mxu0 %v546
    %756 = vmatpush1.bf16.msra.mxu0 %v545
    %757 = vmatprep.subr.bf16.mxu0 %v548
    %758 = vmatpush1.bf16.msra.mxu0 %v547
    %759 = vmatprep.subr.bf16.mxu0 %v550
    %760 = vmatpush1.bf16.msra.mxu0 %v549
    %761 = vmatprep.subr.bf16.mxu0 %v552
    %762 = vmatpush1.bf16.msra.mxu0 %v551
    %763 = vmatprep.subr.bf16.mxu0 %v554
    %764 = vmatpush1.bf16.msra.mxu0 %v553
    %765 = vmatprep.subr.bf16.mxu0 %v556
    %766 = vmatpush1.bf16.msra.mxu0 %v555
    %767 = vmatprep.subr.bf16.mxu0 %v558
    %768 = vmatpush1.bf16.msra.mxu0 %v557
    %769 = vmatprep.subr.bf16.mxu0 %v560
    %770 = vmatpush1.bf16.msra.mxu0 %v559
    %771 = vmatprep.subr.bf16.mxu0 %v562
    %772 = vmatpush1.bf16.msra.mxu0 %v561
    %773 = vmatprep.subr.bf16.mxu0 %v564
    %774 = vmatpush1.bf16.msra.mxu0 %v563
    %775 = vmatprep.subr.bf16.mxu0 %v566
    %776 = vmatpush1.bf16.msra.mxu0 %v565
    %777 = vmatprep.subr.bf16.mxu0 %v568
    %778 = vmatpush1.bf16.msra.mxu0 %v567
    %779 = vmatprep.subr.bf16.mxu0 %v570
    %780 = vmatpush1.bf16.msra.mxu0 %v569
    %781 = vmatprep.subr.bf16.mxu0 %v572
    %782 = vmatpush1.bf16.msra.mxu0 %v571
    %783 = vmatprep.mubr.bf16.mxu0 %v182
    %784 = vmatmul.mubr.bf16.gmra.mrb[0].mxu0 %v181
    %v785 = vpop.f32.mrb[0].mxu0
    %v786 = vadd.f32 %v745, %v785
    %v787 = vpop.f32.mrb[0].mxu0
    %v788 = vadd.f32 %v747, %v787
    %v789 = vpop.f32.mrb[0].mxu0
    %v790 = vpop.f32.mrb[0].mxu0
    %791 = vdwg.mxu0
    %v792 = vmax.f32 %v786, 0.0
    %v793 = vmax.f32 %v788, 0.0
    %v794 = vmin.f32 %v792, 255.0
    %v795 = vmin.f32 %v793, 255.0
    %v799 = vunpack.c.l.b16 %v154
    %v800 = vunpack.c.h.b16 %v154
    %v801 = vunpack.c.l.b16 %v155
    %v802 = vunpack.c.h.b16 %v155
    %v803 = vunpack.c.l.b16 %v156
    %v804 = vunpack.c.h.b16 %v156
    %v805 = vpack.c.b16 %v799, %v799
    %v806 = vpack.c.b16 %v800, %v800
    %v807 = vpack.c.b16 %v801, %v801
    %v808 = vpack.c.b16 %v802, %v802
    %v809 = vpack.c.b16 %v803, %v803
    %v810 = vpack.c.b16 %v804, %v804
    %817 = vmatprep.subr.bf16.mxu0 %v478
    %818 = vmatpush1.bf16.msra.mxu0 %v477
    %819 = vmatprep.subr.bf16.mxu0 %v480
    %820 = vmatpush1.bf16.msra.mxu0 %v479
    %821 = vmatprep.subr.bf16.mxu0 %v482
    %822 = vmatpush1.bf16.msra.mxu0 %v481
    %823 = vmatprep.subr.bf16.mxu0 %v484
    %824 = vmatpush1.bf16.msra.mxu0 %v483
    %825 = vmatprep.subr.bf16.mxu0 %v486
    %826 = vmatpush1.bf16.msra.mxu0 %v485
    %827 = vmatprep.subr.bf16.mxu0 %v488
    %828 = vmatpush1.bf16.msra.mxu0 %v487
    %829 = vmatprep.subr.bf16.mxu0 %v490
    %830 = vmatpush1.bf16.msra.mxu0 %v489
    %831 = vmatprep.subr.bf16.mxu0 %v492
    %832 = vmatpush1.bf16.msra.mxu0 %v491
    %833 = vmatprep.subr.bf16.mxu0 %v494
    %834 = vmatpush1.bf16.msra.mxu0 %v493
    %835 = vmatprep.subr.bf16.mxu0 %v496
    %836 = vmatpush1.bf16.msra.mxu0 %v495
    %837 = vmatprep.subr.bf16.mxu0 %v498
    %838 = vmatpush1.bf16.msra.mxu0 %v497
    %839 = vmatprep.subr.bf16.mxu0 %v500
    %840 = vmatpush1.bf16.msra.mxu0 %v499
    %841 = vmatprep.subr.bf16.mxu0 %v502
    %842 = vmatpush1.bf16.msra.mxu0 %v501
    %843 = vmatprep.subr.bf16.mxu0 %v504
    %844 = vmatpush1.bf16.msra.mxu0 %v503
    %845 = vmatprep.subr.bf16.mxu0 %v506
    %846 = vmatpush1.bf16.msra.mxu0 %v505
    %847 = vmatprep.subr.bf16.mxu0 %v508
    %848 = vmatpush1.bf16.msra.mxu0 %v507
    %849 = vmatprep.mubr.bf16.mxu0 %v806
    %850 = vmatmul.mubr.bf16.gmra.mrb[0].mxu0 %v805
    %v851 = vpop.f32.mrb[0].mxu0
    %v852 = vadd.f32 %v161, %v851
    %v853 = vpop.f32.mrb[0].mxu0
    %v854 = vadd.f32 %v165, %v853
    %v855 = vpop.f32.mrb[0].mxu0
    %v856 = vpop.f32.mrb[0].mxu0
    %857 = vdwg.mxu0
    %858 = vmatprep.subr.bf16.mxu0 %v510
    %859 = vmatpush1.bf16.msra.mxu0 %v509
    %860 = vmatprep.subr.bf16.mxu0 %v512
    %861 = vmatpush1.bf16.msra.mxu0 %v511
    %862 = vmatprep.subr.bf16.mxu0 %v514
    %863 = vmatpush1.bf16.msra.mxu0 %v513
    %864 = vmatprep.subr.bf16.mxu0 %v516
    %865 = vmatpush1.bf16.msra.mxu0 %v515
    %866 = vmatprep.subr.bf16.mxu0 %v518
    %867 = vmatpush1.bf16.msra.mxu0 %v517
    %868 = vmatprep.subr.bf16.mxu0 %v520
    %869 = vmatpush1.bf16.msra.mxu0 %v519
    %870 = vmatprep.subr.bf16.mxu0 %v522
    %871 = vmatpush1.bf16.msra.mxu0 %v521
    %872 = vmatprep.subr.bf16.mxu0 %v524
    %873 = vmatpush1.bf16.msra.mxu0 %v523
    %874 = vmatprep.subr.bf16.mxu0 %v526
    %875 = vmatpush1.bf16.msra.mxu0 %v525
    %876 = vmatprep.subr.bf16.mxu0 %v528
    %877 = vmatpush1.bf16.msra.mxu0 %v527
    %878 = vmatprep.subr.bf16.mxu0 %v530
    %879 = vmatpush1.bf16.msra.mxu0 %v529
    %880 = vmatprep.subr.bf16.mxu0 %v532
    %881 = vmatpush1.bf16.msra.mxu0 %v531
    %882 = vmatprep.subr.bf16.mxu0 %v534
    %883 = vmatpush1.bf16.msra.mxu0 %v533
    %884 = vmatprep.subr.bf16.mxu0 %v536
    %885 = vmatpush1.bf16.msra.mxu0 %v535
    %886 = vmatprep.subr.bf16.mxu0 %v538
    %887 = vmatpush1.bf16.msra.mxu0 %v537
    %888 = vmatprep.subr.bf16.mxu0 %v540
    %889 = vmatpush1.bf16.msra.mxu0 %v539
    %890 = vmatprep.mubr.bf16.mxu0 %v808
    %891 = vmatmul.mubr.bf16.gmra.mrb[0].mxu0 %v807
    %v892 = vpop.f32.mrb[0].mxu0
    %v893 = vadd.f32 %v852, %v892
    %v894 = vpop.f32.mrb[0].mxu0
    %v895 = vadd.f32 %v854, %v894
    %v896 = vpop.f32.mrb[0].mxu0
    %v897 = vpop.f32.mrb[0].mxu0
    %898 = vdwg.mxu0
    %899 = vmatprep.subr.bf16.mxu0 %v542
    %900 = vmatpush1.bf16.msra.mxu0 %v541
    %901 = vmatprep.subr.bf16.mxu0 %v544
    %902 = vmatpush1.bf16.msra.mxu0 %v543
    %903 = vmatprep.subr.bf16.mxu0 %v546
    %904 = vmatpush1.bf16.msra.mxu0 %v545
    %905 = vmatprep.subr.bf16.mxu0 %v548
    %906 = vmatpush1.bf16.msra.mxu0 %v547
    %907 = vmatprep.subr.bf16.mxu0 %v550
    %908 = vmatpush1.bf16.msra.mxu0 %v549
    %909 = vmatprep.subr.bf16.mxu0 %v552
    %910 = vmatpush1.bf16.msra.mxu0 %v551
    %911 = vmatprep.subr.bf16.mxu0 %v554
    %912 = vmatpush1.bf16.msra.mxu0 %v553
    %913 = vmatprep.subr.bf16.mxu0 %v556
    %914 = vmatpush1.bf16.msra.mxu0 %v555
    %915 = vmatprep.subr.bf16.mxu0 %v558
    %916 = vmatpush1.bf16.msra.mxu0 %v557
    %917 = vmatprep.subr.bf16.mxu0 %v560
    %918 = vmatpush1.bf16.msra.mxu0 %v559
    %919 = vmatprep.subr.bf16.mxu0 %v562
    %920 = vmatpush1.bf16.msra.mxu0 %v561
    %921 = vmatprep.subr.bf16.mxu0 %v564
    %922 = vmatpush1.bf16.msra.mxu0 %v563
    %923 = vmatprep.subr.bf16.mxu0 %v566
    %924 = vmatpush1.bf16.msra.mxu0 %v565
    %925 = vmatprep.subr.bf16.mxu0 %v568
    %926 = vmatpush1.bf16.msra.mxu0 %v567
    %927 = vmatprep.subr.bf16.mxu0 %v570
    %928 = vmatpush1.bf16.msra.mxu0 %v569
    %929 = vmatprep.subr.bf16.mxu0 %v572
    %930 = vmatpush1.bf16.msra.mxu0 %v571
    %931 = vmatprep.mubr.bf16.mxu0 %v810
    %932 = vmatmul.mubr.bf16.gmra.mrb[0].mxu0 %v809
    %v933 = vpop.f32.mrb[0].mxu0
    %v934 = vadd.f32 %v893, %v933
    %v935 = vpop.f32.mrb[0].mxu0
    %v936 = vadd.f32 %v895, %v935
    %v937 = vpop.f32.mrb[0].mxu0
    %v938 = vpop.f32.mrb[0].mxu0
    %939 = vdwg.mxu0
    %v940 = vmax.f32 %v934, 0.0
    %v941 = vmax.f32 %v936, 0.0
    %v942 = vmin.f32 %v940, 255.0
    %v943 = vmin.f32 %v941, 255.0
    %v944 = vld [vmem:[%s5] ss:$2 sm:$0x3]
    %s945 = scalar_lea.vmem %s5, 1
    %v946 = vld [vmem:[%s945] ss:$2 sm:$0x3]
    %v948 = vlaneseq
    %v949 = vshrl.u32 %v948, 7
    %v950 = vsub.s32 0, %v949
    %v951 = vrot.slane %v944, %v950
    %v952 = vlaneseq
    %v953 = vshrl.u32 %v952, 7
    %v954 = vsub.s32 1, %v953
    %v955 = vrot.slane %v944, %v954
    %v958 = vmul.f32 %v794, %v951
    %v959 = vmul.f32 %v795, %v955
    %v960 = vadd.f32 %v958, %v959
    %961 = vadd.xlane.f32.xlu0 %v960
    %v962 = vpop.xlane.xlu0 %961
    %v964 = vlaneseq
    %v965 = vshrl.u32 %v964, 7
    %v966 = vsub.s32 0, %v965
    %v967 = vrot.slane %v946, %v966
    %v968 = vlaneseq
    %v969 = vshrl.u32 %v968, 7
    %v970 = vsub.s32 1, %v969
    %v971 = vrot.slane %v946, %v970
    %v974 = vmul.f32 %v942, %v967
    %v975 = vmul.f32 %v943, %v971
    %v976 = vadd.f32 %v974, %v975
    %977 = vadd.xlane.f32.xlu0 %v976
    %v978 = vpop.xlane.xlu0 %977
    %v979 = vadd.f32 %v962, %v978
    %s980 = sld [smem:[#allocation2]]
    %v981 = vstv %s980
    %v982 = vadd.f32 %v979, %v981
    %vm983 = vcmask 7168
    %984 = vst.msk [vmem:[%s6] sm:$0xff] %vm983, %v982
    // Predicated region
    $region34: #{nnue_forward.1} parent=1 // pred_check
      _
    $region35: #{nnue_forward.1} parent=1 // pred_check_branch
      %986 = sbr.rel (0) target = $region37
    $region36: #{nnue_forward.1} parent=1 // pred_region
      _
    $region37: #{nnue_forward.1} parent=1 // pred_fallthru
      _
    // Predicated region
    $region38: #{nnue_forward.1} parent=1 // pred_check
      _
    $region39: #{nnue_forward.1} parent=1 // pred_check_branch
      %988 = sbr.rel (0) target = $region41
    $region40: #{nnue_forward.1} parent=1 // pred_region
      _
    $region41: #{nnue_forward.1} parent=1 // pred_fallthru
      _
    %989 = vsyncpa [#allocation4], 1
    %990 = vsyncpa [#allocation6], 1

</llo_original>
